<compile_context>
chip_gen: v7x
topology: tpu7x:2x2x1
jax: 0.10.0
libtpu: 0.0.40
codegen_flags: <defaults>
</compile_context>

<pallas_src>
import functools

import jax
import jax.numpy as jnp
from jax.experimental import pallas as pl
from jax.experimental.pallas import tpu as pltpu


def _round_up(x, m):
    return ((x + m - 1) // m) * m


def _cdiv(a, b):
    return (a + b - 1) // b


def _to_2d(x):
    if x.ndim == 0:
        return x.reshape(1, 1)
    if x.ndim == 1:
        return x.reshape(-1, 1)
    if x.ndim == 2:
        return x
    return x.reshape(-1, x.shape[-1])


def _margin_loss_kernel(pos_ref, neg_ref, out_ref, *, margin, n_rows, n_cols, tb,
                        mask_rows, mask_cols):
    """One row-tile: f32 hinge + (8, W) vreg-shaped partial sums (VPU-only hot path)."""
    pos = pos_ref[...].astype(jnp.float32)   # (tb, 1) or (tb, W)
    neg = neg_ref[...].astype(jnp.float32)   # (tb, W) or (tb, 1)
    hinge = jnp.maximum(neg - pos + jnp.float32(margin), jnp.float32(0.0))

    shape = hinge.shape                      # (tb, W) after in-kernel broadcast
    if mask_rows or mask_cols:               # trace-time flags: no masking cost when aligned
        valid = None
        if mask_rows:
            row_ids = (jax.lax.broadcasted_iota(jnp.int32, shape, 0)
                       + pl.program_id(0) * tb)
            valid = row_ids < n_rows
        if mask_cols:
            col_ids = jax.lax.broadcasted_iota(jnp.int32, shape, 1)
            cmask = col_ids < n_cols
            valid = cmask if valid is None else (valid & cmask)
        hinge = jnp.where(valid, hinge, jnp.float32(0.0))

    w = shape[1]
    # Fold rows in groups of 8: layout-preserving reshape + pure VPU vreg adds.
    out_ref[...] = hinge.reshape(tb // 8, 8, w).sum(axis=0)


def _pick_row_tile(total_rows, bytes_per_row, cap=4096, target_bytes=2 * 1024 * 1024):
    """Row tile: multiple of 8, ~target_bytes of combined input per grid step."""
    target_rows = max(8, target_bytes // max(bytes_per_row, 1))
    tb = min(_round_up(total_rows, 8), (target_rows // 8) * 8, cap)
    return max(tb, 8)


def _launch(pos, neg, margin, *, tb, n_rows, n_cols, mask_rows, mask_cols):
    bpad, wp = pos.shape
    _, wn = neg.shape
    W = max(wp, wn)                          # >= 128 on every path -> lane-dense output
    num_blocks = bpad // tb

    kernel = functools.partial(
        _margin_loss_kernel,
        margin=float(margin), n_rows=n_rows, n_cols=n_cols, tb=tb,
        mask_rows=mask_rows, mask_cols=mask_cols,
    )

    return pl.pallas_call(
        kernel,
        out_shape=jax.ShapeDtypeStruct((num_blocks * 8, W), jnp.float32),
        grid=(num_blocks,),
        in_specs=[
            pl.BlockSpec((tb, wp), lambda i: (i, 0)),   # pos: narrow column or full slab
            pl.BlockSpec((tb, wn), lambda i: (i, 0)),   # neg: lane-dense (multiple of 128)
        ],
        out_specs=pl.BlockSpec((8, W), lambda i: (i, 0)),
        compiler_params=pltpu.CompilerParams(
            dimension_semantics=("parallel",),          # independent blocks -> both TCs on v7x
        ),
    )(pos, neg)


def margin_ranking_loss(pos_score, neg_score, margin):
    """Pallas implementation of nn.MarginRankingLoss(margin)(pos, neg, y=1)."""
    pos = _to_2d(jnp.asarray(pos_score))
    neg = _to_2d(jnp.asarray(neg_score))
    if not jnp.issubdtype(pos.dtype, jnp.floating):
        pos = pos.astype(jnp.float32)
    if not jnp.issubdtype(neg.dtype, jnp.floating):
        neg = neg.astype(jnp.float32)

    if pos.shape[0] != neg.shape[0]:
        # Row-broadcast fallback (not the KG path); materialize just this case.
        pos, neg = jnp.broadcast_arrays(pos, neg)

    B = pos.shape[0]
    kp, kn = pos.shape[1], neg.shape[1]
    if not (kp == kn or kp == 1 or kn == 1):
        raise ValueError(f"incompatible shapes {pos.shape} vs {neg.shape}")
    N = max(kp, kn)
    total = B * N

    if kp == kn:
        # Identical shapes (covers 1-D scores and (B,1) vs (B,1)): flatten to a lane-dense
        # (rows, 128) layout.  Padded slots get pos=+inf / neg=-inf so they hinge to exactly
        # 0 and the kernel carries no mask.
        Wf = 128
        rows = _cdiv(total, Wf)
        bytes_per_row = Wf * (pos.dtype.itemsize + neg.dtype.itemsize)
        tb = _pick_row_tile(rows, bytes_per_row)
        rpad = _round_up(rows, tb)
        tpad = rpad * Wf

        def flat_pad(x, fill):
            x = x.reshape(-1)
            if tpad != total:
                x = jnp.pad(x, (0, tpad - total), constant_values=fill)
            return x.reshape(rpad, Wf)

        pos_p = flat_pad(pos, jnp.inf)
        neg_p = flat_pad(neg, -jnp.inf)
        partials = _launch(pos_p, neg_p, margin, tb=tb,
                           n_rows=rpad, n_cols=Wf,
                           mask_rows=False, mask_cols=False)
    else:
        # Column path: one side is a (B,1) column broadcast in-kernel against the wide side.
        W = _round_up(N, 128)

        def pad_cols(x):
            k = x.shape[1]
            if k == 1 or k == W:
                return x
            return jnp.pad(x, ((0, 0), (0, W - k)))

        pos_p = pad_cols(pos)
        neg_p = pad_cols(neg)
        wp, wn = pos_p.shape[1], neg_p.shape[1]

        bytes_per_row = wp * pos_p.dtype.itemsize + wn * neg_p.dtype.itemsize
        tb = _pick_row_tile(B, bytes_per_row)
        bpad = _round_up(B, tb)

        def pad_rows(x):
            if x.shape[0] == bpad:
                return x
            return jnp.pad(x, ((0, bpad - x.shape[0]), (0, 0)))

        pos_p = pad_rows(pos_p)
        neg_p = pad_rows(neg_p)
        partials = _launch(pos_p, neg_p, margin, tb=tb,
                           n_rows=B, n_cols=N,
                           mask_rows=bpad != B, mask_cols=W != N)

    # Tiny epilogue in plain JAX: cross-lane/sublane reduce once + multiply by reciprocal.
    return jnp.sum(partials) * jnp.float32(1.0 / total)


if __name__ == "__main__":
    # "args.margin" analogue -- deterministic in-script hyperparameter.
    margin = 6.0

    key = jax.random.PRNGKey(0)
    k1, k2, k3, k4, k5, k6 = jax.random.split(key, 6)

    # KG-style shapes: one positive score per triple, 128 negatives each.
    pos_score = jax.random.normal(k1, (16, 1), dtype=jnp.float32)
    neg_score = jax.random.normal(k2, (16, 128), dtype=jnp.float32)
    loss = jax.block_until_ready(margin_ranking_loss(pos_score, neg_score, margin))
    ref = jnp.mean(jnp.maximum(0.0, -(pos_score - neg_score) + margin))
    assert jnp.allclose(loss, ref, rtol=1e-5, atol=1e-5), (loss, ref)

    # Ragged shapes (batch / num_neg not multiples of 8 / 128) exercise the masking path.
    pos2 = jax.random.normal(k3, (13, 1), dtype=jnp.float32)
    neg2 = jax.random.normal(k4, (13, 100), dtype=jnp.float32)
    loss2 = jax.block_until_ready(margin_ranking_loss(pos2, neg2, margin))
    ref2 = jnp.mean(jnp.maximum(0.0, -(pos2 - neg2) + margin))
    assert jnp.allclose(loss2, ref2, rtol=1e-5, atol=1e-5), (loss2, ref2)

    # Identical 1-D shapes exercise the lane-dense flatten path (sentinel padding, no mask).
    pos3 = jax.random.normal(k5, (200,), dtype=jnp.float32)
    neg3 = jax.random.normal(k6, (200,), dtype=jnp.float32)
    loss3 = jax.block_until_ready(margin_ranking_loss(pos3, neg3, margin))
    ref3 = jnp.mean(jnp.maximum(0.0, -(pos3 - neg3) + margin))
    assert jnp.allclose(loss3, ref3, rtol=1e-5, atol=1e-5), (loss3, ref3)

    print("KERNEL_OK")
</pallas_src>

<mosaic_0001>
module attributes {stable_mosaic.version = 11 : i64} {
  func.func @_margin_loss_kernel(%arg0: i32, %arg1: memref<16x1xf32, #tpu.memory_space<vmem>>, %arg2: memref<16x128xf32, #tpu.memory_space<vmem>>, %arg3: memref<8x128xf32, #tpu.memory_space<vmem>>) attributes {dimension_semantics = [#tpu.dimension_semantics<parallel>], iteration_bounds = array<i64: 1>, scalar_prefetch = 0 : i64, scratch_operands = 0 : i64, tpu.core_type = #tpu.core_type<tc>, window_params = [{transform_indices = @transform_0, window_bounds = array<i64: 16, 1>}, {transform_indices = @transform_1, window_bounds = array<i64: 16, 128>}, {transform_indices = @transform_2, window_bounds = array<i64: 8, 128>}]} {
    %c0 = arith.constant 0 : index
    %c0_0 = arith.constant 0 : index
    %0 = vector.load %arg1[%c0, %c0_0] : memref<16x1xf32, #tpu.memory_space<vmem>>, vector<16x1xf32>
    %c0_1 = arith.constant 0 : index
    %c0_2 = arith.constant 0 : index
    %1 = vector.load %arg2[%c0_1, %c0_2] : memref<16x128xf32, #tpu.memory_space<vmem>>, vector<16x128xf32>
    %2 = vector.broadcast %0 : vector<16x1xf32> to vector<16x128xf32>
    %3 = arith.subf %1, %2 : vector<16x128xf32>
    %cst = arith.constant 6.000000e+00 : f32
    %4 = vector.broadcast %cst : f32 to vector<16x128xf32>
    %5 = arith.addf %3, %4 : vector<16x128xf32>
    %cst_3 = arith.constant 0.000000e+00 : f32
    %6 = vector.broadcast %cst_3 : f32 to vector<16x128xf32>
    %7 = arith.maximumf %5, %6 : vector<16x128xf32>
    %8 = vector.shape_cast %7 : vector<16x128xf32> to vector<2x8x128xf32>
    %cst_4 = arith.constant dense<0.000000e+00> : vector<8x128xf32>
    %9 = vector.multi_reduction <add>, %8, %cst_4 [0] : vector<2x8x128xf32> to vector<8x128xf32>
    %c0_5 = arith.constant 0 : index
    %c0_6 = arith.constant 0 : index
    %10 = vector.load %arg3[%c0_5, %c0_6] : memref<8x128xf32, #tpu.memory_space<vmem>>, vector<8x128xf32>
    tpu.vector_store %arg3[%c0_5, %c0_6], %9 {strides = array<i32>} : memref<8x128xf32, #tpu.memory_space<vmem>>, vector<8x128xf32>,
    return
  }
  func.func @transform_0(%arg0: i32) -> (i32, i32) {
    %c0_i32 = arith.constant 0 : i32
    %c0_i32_0 = arith.constant 0 : i32
    return %arg0, %c0_i32 : i32, i32
  }
  func.func @transform_1(%arg0: i32) -> (i32, i32) {
    %c0_i32 = arith.constant 0 : i32
    %c0_i32_0 = arith.constant 0 : i32
    return %arg0, %c0_i32 : i32, i32
  }
  func.func @transform_2(%arg0: i32) -> (i32, i32) {
    %c0_i32 = arith.constant 0 : i32
    %c0_i32_0 = arith.constant 0 : i32
    return %arg0, %c0_i32 : i32, i32
  }
}

</mosaic_0001>

<llo_original>
// kernel: tpu_custom_call.1
$region0: #{tpu_custom_call.1}
  #allocation0 [shape = 'u32[]', space=smem, size = 0x4, offset = 0x4, fixed_abs, tag = 'smem constant byte address 0x4 - core index']
  #allocation1 [shape = 'u32[144,128]{1,0:T(1,128)}', space=vmem, size = 0x12000, scoped, tag = 'internal scratch']
  %s0 = inlined_call_operand.vmem [shape: f32[16,1], index: 0, kind: input, shape index: {}]
  %s1 = inlined_call_operand.vmem [shape: f32[16,128], index: 1, kind: input, shape index: {}]
  %s2 = inlined_call_operand.hbm [shape: f32[8,128], index: 2, kind: output, shape index: {}]
  %s3 = sld [smem:[#allocation0]]
  $region18: #{tpu_custom_call.1} parent=0
    _
  %s5 = ssub.s32 1, %s3
  %s6 = scalar_select 0, %s5, %s3
  $region1: #{tpu_custom_call.1} parent=0
    #allocation2 [shape = 'u8[4096]{0}', space=vmem, size = 0x1000, scoped, tag = 'output window, operand 0, single buffered']
    #allocation3 [shape = 's32[1]{0}', space=sflag, size = 0x4, scoped, tag = 'scoped memory for tpu_custom_call.1']
    %7 = vsyncpa [#allocation3], 0
    // Predicated region
    $region2: #{tpu_custom_call.1} parent=1 // pred_check
      _
    $region3: #{tpu_custom_call.1} parent=1 // pred_check_branch
      %9 = sbr.rel (0) target = $region5
    $region4: #{tpu_custom_call.1} parent=1 // pred_region
      _
    $region5: #{tpu_custom_call.1} parent=1 // pred_fallthru
      _
    // Predicated region
    $region6: #{tpu_custom_call.1} parent=1 // pred_check
      _
    $region7: #{tpu_custom_call.1} parent=1 // pred_check_branch
      %11 = sbr.rel (0) target = $region9
    $region8: #{tpu_custom_call.1} parent=1 // pred_region
      _
    $region9: #{tpu_custom_call.1} parent=1 // pred_fallthru
      _
    %v12 = vld [vmem:[%s0] sm:$0xff]
    %v13 = vld [vmem:[%s0 + $0x8] sm:$0xff]
    %v14 = vld [vmem:[%s1] sm:$0xff]
    %v15 = vld [vmem:[%s1 + $0x8] sm:$0xff]
    %17 = vset.pattern.permute.xlu0 0
    %18 = vperm.xlu0 %17, %v12
    %v19 = vpop.permute.xlu0 %18
    %22 = vset.pattern.permute.xlu0 0
    %23 = vperm.xlu0 %22, %v13
    %v24 = vpop.permute.xlu0 %23
    %v26 = vsub.f32 %v14, %v19
    %v27 = vsub.f32 %v15, %v24
    %v28 = vadd.f32 %v26, 6.0
    %v29 = vadd.f32 %v27, 6.0
    %v30 = vmax.f32 %v28, 0.0
    %v31 = vmax.f32 %v29, 0.0
    %v32 = vadd.f32 %v30, %v31
    %33 = vst [vmem:[#allocation2] sm:$0xff] %v32
    // Predicated region
    $region10: #{tpu_custom_call.1} parent=1 // pred_check
      _
    $region11: #{tpu_custom_call.1} parent=1 // pred_check_branch
      %35 = sbr.rel (0) target = $region13
    $region12: #{tpu_custom_call.1} parent=1 // pred_region
      %s37 = ssub.s32 128, 128
      %38 = vsyncadd [#allocation3], %s37
      %s40 = sshll.u32 [#allocation2], 4
      %s41 = int_to_ptr.vmem [resolvable:$true] %s40
      %43 = dma.vmem_to_hbm [thread:$0]  %s41, 128, %s2, [#allocation3]
    $region13: #{tpu_custom_call.1} parent=1 // pred_fallthru
      _
    // Predicated region
    $region14: #{tpu_custom_call.1} parent=1 // pred_check
      _
    $region15: #{tpu_custom_call.1} parent=1 // pred_check_branch
      %45 = sbr.rel (0) target = $region17
    $region16: #{tpu_custom_call.1} parent=1 // pred_region
      %46 = dma.done [#allocation3], 128
    $region17: #{tpu_custom_call.1} parent=1 // pred_fallthru
      _
    %47 = vsyncpa [#allocation3], 1

</llo_original>
